<compile_context>
chip_gen: v5e
topology: v5e:2x2
jax: 0.10.0
libtpu: 0.0.40
codegen_flags: <defaults>
</compile_context>

<pallas_src>
import functools

import jax
import jax.numpy as jnp
from jax.experimental import pallas as pl
from jax.experimental.pallas import tpu as pltpu

_MB = 1024 * 1024


def _largest_divisor_within(n, cap):
    """Largest divisor of n that is <= cap (always >= 1)."""
    cap = max(1, min(int(n), int(cap)))
    for d in range(cap, 0, -1):
        if n % d == 0:
            return d
    return 1


def _vmem_budget_bytes():
    """Per-generation scoped-VMEM limit and DMA block-byte target."""
    capacity = 64 * _MB  # conservative fallback = v7x physical VMEM per TC
    try:
        capacity = int(getattr(pltpu.get_tpu_info(), "vmem_capacity_bytes", capacity))
    except Exception:
        pass
    # ~3/4 of physical, capped: ~96 MiB on v5e/v6e (128 MiB parts), 48 MiB on v7x.
    vmem_limit = int(min(96 * _MB, max(32 * _MB, (capacity * 3) // 4)))
    # Double-buffered input block + strip-bounded f32 temporaries must fit.
    target_block_bytes = int(min(16 * _MB, vmem_limit // 4))
    return vmem_limit, target_block_bytes


def _tv_partial_kernel(x_ref, o_ref, *, strip, n_strips, hw_roll_h, hw_roll_w):
    """Per-block partial sums of squared neighbour differences.

    x_ref: (b_nc, H, W) block in VMEM, native dtype.
    o_ref: (1, 2, H, W) f32; [0] = height-diff partials, [1] = width-diff
           partials.  Row 0 of the h-map and column 0 of the w-map hold the
           wrapped-around (invalid) difference and are dropped by the wrapper,
           so no masking is needed here.
    """
    _, h, w = x_ref.shape
    # Hardware (XLU) roll for tile-aligned dims, slice+concat roll otherwise.
    roll_h = pltpu.roll if hw_roll_h else jnp.roll
    roll_w = pltpu.roll if hw_roll_w else jnp.roll

    def strip_sums(xs):
        # xs: (strip, H, W) native dtype.  rolled[:, r, :] == xs[:, r-1, :]
        # (index 0 wraps).  Subtract in f32 (v5e has no bf16 VALU; no-op for
        # f32 inputs).
        x32 = xs.astype(jnp.float32)
        hd = x32 - roll_h(xs, 1, 1).astype(jnp.float32)
        wd = x32 - roll_w(xs, 1, 2).astype(jnp.float32)
        # Reduce only over the leading (vreg-major) axis: pure VALU adds, no
        # XLU cross-lane/sublane reduction in the hot loop.
        return jnp.sum(hd * hd, axis=0), jnp.sum(wd * wd, axis=0)

    if n_strips == 1:
        h_acc, w_acc = strip_sums(x_ref[...])
    else:
        def body(s, carry):
            h_acc, w_acc = carry
            start = pl.multiple_of(s * strip, strip)
            hs, ws = strip_sums(x_ref[pl.ds(start, strip), :, :])
            return h_acc + hs, w_acc + ws

        init = (jnp.zeros((h, w), jnp.float32), jnp.zeros((h, w), jnp.float32))
        h_acc, w_acc = jax.lax.fori_loop(0, n_strips, body, init,
                                         unroll=(n_strips <= 8))

    o_ref[0, 0, :, :] = h_acc
    o_ref[0, 1, :, :] = w_acc


def tv_loss(x, tvloss_weight=1.0, block_nc=None, strip_bytes=1 * _MB):
    """TVLoss forward. x: (N, C, H, W). Returns a scalar float32 loss.

    block_nc / strip_bytes are tuning/testing knobs; both are snapped to
    divisors so semantics never change.
    """
    n, c, h, w = x.shape
    # Matches the (unguarded) PyTorch reference: h==1 / w==1 yields inf/nan.
    count_h = float((h - 1) * w)
    count_w = float(h * (w - 1))

    nc = n * c
    x3 = x.reshape(nc, h, w)
    itemsize = x3.dtype.itemsize
    slab_bytes = h * w * itemsize

    vmem_limit, target_block_bytes = _vmem_budget_bytes()

    # Block along the fused N*C axis only; b_nc always divides N*C so no input
    # padding (and no tail masking) is ever required.
    if block_nc is None:
        cap = max(1, target_block_bytes // max(slab_bytes, 1))
    else:
        cap = max(1, int(block_nc))
    b_nc = _largest_divisor_within(nc, cap)
    num_blocks = nc // b_nc

    # Strip-mine inside the block so f32 temporaries stay ~strip_bytes
    # regardless of how large the (double-buffered) DMA block is.
    strip_cap = max(1, int(strip_bytes) // max(slab_bytes, 1))
    strip = _largest_divisor_within(b_nc, strip_cap)
    n_strips = b_nc // strip

    # Use the hardware roll only when the rolled dims are natively tiled; fall
    # back to the slice+concat roll for small / unaligned dims where the
    # traffic is negligible anyway.
    hw_roll_w = (w % 128 == 0)
    hw_roll_h = (h % 8 == 0) and hw_roll_w

    kernel = functools.partial(
        _tv_partial_kernel, strip=strip, n_strips=n_strips,
        hw_roll_h=hw_roll_h, hw_roll_w=hw_roll_w)

    out = pl.pallas_call(
        kernel,
        out_shape=jax.ShapeDtypeStruct((num_blocks, 2, h, w), jnp.float32),
        grid_spec=pltpu.PrefetchScalarGridSpec(
            num_scalar_prefetch=0,
            grid=(num_blocks,),
            in_specs=[pl.BlockSpec((b_nc, h, w), lambda i: (i, 0, 0))],
            out_specs=pl.BlockSpec((1, 2, h, w), lambda i: (i, 0, 0, 0)),
        ),
        compiler_params=pltpu.CompilerParams(
            # Disjoint per-block outputs -> safe to shard across v7x's 2 TCs.
            dimension_semantics=("parallel",),
            vmem_limit_bytes=vmem_limit,
        ),
        cost_estimate=pl.CostEstimate(
            flops=6 * x3.size,
            transcendentals=0,
            bytes_accessed=x3.size * itemsize + num_blocks * 2 * h * w * 4,
        ),
    )(x3)

    # Final reduction + scaling exactly once, outside the kernel.  Drop the
    # wrapped-around row / column produced by the roll.
    h_tv = jnp.sum(out[:, 0, 1:, :])
    w_tv = jnp.sum(out[:, 1, :, 1:])
    loss = tvloss_weight * 2.0 * (h_tv / count_h + w_tv / count_w) / float(n)
    return loss.astype(jnp.float32)


def _tv_loss_ref(x, tvloss_weight=1.0):
    n, _, h, w = x.shape
    count_h = (h - 1) * w
    count_w = h * (w - 1)
    h_tv = jnp.sum(jnp.square(x[:, :, 1:, :] - x[:, :, :-1, :]))
    w_tv = jnp.sum(jnp.square(x[:, :, :, 1:] - x[:, :, :, :-1]))
    return tvloss_weight * 2.0 * (h_tv / count_h + w_tv / count_w) / n


if __name__ == "__main__":
    key = jax.random.PRNGKey(0)

    # Primary: small NCHW input matching the module spec.  W=16 < 128, so this
    # exercises the fallback (slice+concat) roll path.
    x1 = jax.random.normal(key, (2, 4, 16, 16), dtype=jnp.float32)
    ref1 = _tv_loss_ref(x1)

    loss1 = jax.block_until_ready(tv_loss(x1))
    assert jnp.allclose(loss1, ref1, rtol=1e-5, atol=1e-5), (loss1, ref1)

    # Multi-block grid: block_nc=3 snaps to the divisor 2 -> 4 blocks, no
    # padding, per-block partial accumulation path.
    loss2 = jax.block_until_ready(tv_loss(x1, block_nc=3))
    assert jnp.allclose(loss2, ref1, rtol=1e-5, atol=1e-5), (loss2, ref1)

    # Strip-mined path: tiny strip budget forces n_strips > 1 (fori_loop +
    # accumulator carries) on the same input.
    loss3 = jax.block_until_ready(tv_loss(x1, block_nc=8, strip_bytes=2048))
    assert jnp.allclose(loss3, ref1, rtol=1e-5, atol=1e-5), (loss3, ref1)

    # Lane/sublane tile-aligned shape exercises the pltpu.roll (XLU) diff path
    # together with a multi-block grid.
    x2 = jax.random.normal(jax.random.PRNGKey(0), (2, 4, 16, 128),
                           dtype=jnp.float32)
    ref2 = _tv_loss_ref(x2)
    loss4 = jax.block_until_ready(tv_loss(x2, block_nc=2))
    assert jnp.allclose(loss4, ref2, rtol=1e-5, atol=1e-5), (loss4, ref2)

    print("KERNEL_OK")
</pallas_src>

<mosaic_0001>
module attributes {stable_mosaic.version = 11 : i64} {
  func.func @_tv_partial_kernel(%arg0: i32, %arg1: memref<8x16x16xf32, #tpu.memory_space<vmem>>, %arg2: memref<1x2x16x16xf32, #tpu.memory_space<vmem>>) attributes {dimension_semantics = [#tpu.dimension_semantics<parallel>], iteration_bounds = array<i64: 1>, scalar_prefetch = 0 : i64, scratch_operands = 0 : i64, tpu.core_type = #tpu.core_type<tc>, window_params = [{transform_indices = @transform_0, window_bounds = array<i64: 8, 16, 16>}, {transform_indices = @transform_1, window_bounds = array<i64: 1, 2, 16, 16>}]} {
    %c0 = arith.constant 0 : index
    %c0_0 = arith.constant 0 : index
    %c0_1 = arith.constant 0 : index
    %0 = vector.load %arg1[%c0, %c0_0, %c0_1] : memref<8x16x16xf32, #tpu.memory_space<vmem>>, vector<8x16x16xf32>
    %1 = vector.extract_strided_slice %0 {offsets = [0, 15, 0], sizes = [8, 1, 16], strides = [1, 1, 1]} : vector<8x16x16xf32> to vector<8x1x16xf32>
    %2 = vector.extract_strided_slice %0 {offsets = [0, 0, 0], sizes = [8, 15, 16], strides = [1, 1, 1]} : vector<8x16x16xf32> to vector<8x15x16xf32>
    %3 = tpu.concatenate %1, %2 in 1 : vector<8x1x16xf32>, vector<8x15x16xf32> -> vector<8x16x16xf32>
    %4 = arith.subf %0, %3 : vector<8x16x16xf32>
    %5 = vector.extract_strided_slice %0 {offsets = [0, 0, 15], sizes = [8, 16, 1], strides = [1, 1, 1]} : vector<8x16x16xf32> to vector<8x16x1xf32>
    %6 = vector.extract_strided_slice %0 {offsets = [0, 0, 0], sizes = [8, 16, 15], strides = [1, 1, 1]} : vector<8x16x16xf32> to vector<8x16x15xf32>
    %7 = tpu.concatenate %5, %6 in 2 : vector<8x16x1xf32>, vector<8x16x15xf32> -> vector<8x16x16xf32>
    %8 = arith.subf %0, %7 : vector<8x16x16xf32>
    %9 = arith.mulf %4, %4 : vector<8x16x16xf32>
    %cst = arith.constant dense<0.000000e+00> : vector<16x16xf32>
    %10 = vector.multi_reduction <add>, %9, %cst [0] : vector<8x16x16xf32> to vector<16x16xf32>
    %11 = arith.mulf %8, %8 : vector<8x16x16xf32>
    %cst_2 = arith.constant dense<0.000000e+00> : vector<16x16xf32>
    %12 = vector.multi_reduction <add>, %11, %cst_2 [0] : vector<8x16x16xf32> to vector<16x16xf32>
    %c0_3 = arith.constant 0 : index
    %c0_4 = arith.constant 0 : index
    %c0_5 = arith.constant 0 : index
    %c0_6 = arith.constant 0 : index
    %13 = vector.load %arg2[%c0_3, %c0_4, %c0_5, %c0_6] : memref<1x2x16x16xf32, #tpu.memory_space<vmem>>, vector<1x1x16x16xf32>
    %14 = vector.shape_cast %13 : vector<1x1x16x16xf32> to vector<16x16xf32>
    %15 = vector.shape_cast %10 : vector<16x16xf32> to vector<1x1x16x16xf32>
    tpu.vector_store %arg2[%c0_3, %c0_4, %c0_5, %c0_6], %15 {strides = array<i32>} : memref<1x2x16x16xf32, #tpu.memory_space<vmem>>, vector<1x1x16x16xf32>,
    %c0_7 = arith.constant 0 : index
    %c1 = arith.constant 1 : index
    %c0_8 = arith.constant 0 : index
    %c0_9 = arith.constant 0 : index
    %16 = vector.load %arg2[%c0_7, %c1, %c0_8, %c0_9] : memref<1x2x16x16xf32, #tpu.memory_space<vmem>>, vector<1x1x16x16xf32>
    %17 = vector.shape_cast %16 : vector<1x1x16x16xf32> to vector<16x16xf32>
    %18 = vector.shape_cast %12 : vector<16x16xf32> to vector<1x1x16x16xf32>
    tpu.vector_store %arg2[%c0_7, %c1, %c0_8, %c0_9], %18 {strides = array<i32>} : memref<1x2x16x16xf32, #tpu.memory_space<vmem>>, vector<1x1x16x16xf32>,
    return
  }
  func.func @transform_0(%arg0: i32) -> (i32, i32, i32) {
    %c0_i32 = arith.constant 0 : i32
    %c0_i32_0 = arith.constant 0 : i32
    %c0_i32_1 = arith.constant 0 : i32
    return %arg0, %c0_i32, %c0_i32_0 : i32, i32, i32
  }
  func.func @transform_1(%arg0: i32) -> (i32, i32, i32, i32) {
    %c0_i32 = arith.constant 0 : i32
    %c0_i32_0 = arith.constant 0 : i32
    %c0_i32_1 = arith.constant 0 : i32
    %c0_i32_2 = arith.constant 0 : i32
    return %arg0, %c0_i32, %c0_i32_0, %c0_i32_1 : i32, i32, i32, i32
  }
}

</mosaic_0001>

<llo_original>
// kernel: tpu_custom_call.1
$region0: #{tpu_custom_call.1}
  #allocation0 [shape = 'u32[]', space=smem, size = 0x4, offset = 0x4, fixed_abs, tag = 'smem constant byte address 0x4 - core index']
  #allocation1 [shape = 'u32[72,128]{1,0:T(1,128)}', space=vmem, size = 0x9000, scoped, tag = 'internal scratch']
  %s0 = inlined_call_operand.hbm [shape: f32[8,16,16], index: 0, kind: input, shape index: {}]
  %s1 = inlined_call_operand.hbm [shape: f32[1,2,16,16], index: 1, kind: output, shape index: {}]
  %s2 = sld [smem:[#allocation0]]
  $region18: #{tpu_custom_call.1} parent=0
    _
  %s4 = ssub.s32 1, %s2
  %s5 = scalar_select 0, %s4, %s2
  $region1: #{tpu_custom_call.1} parent=0
    #allocation2 [shape = 'u8[65536]{0}', space=vmem, size = 0x10000, scoped, tag = 'input window, operand 0, single buffered']
    #allocation3 [shape = 's32[1]{0}', space=sflag, size = 0x4, scoped, tag = 'scoped memory for tpu_custom_call.1']
    #allocation4 [shape = 's32[1]{0}', space=sflag, size = 0x4, scoped, tag = 'scoped memory for tpu_custom_call.1']
    #allocation5 [shape = 'u8[16384]{0}', space=vmem, size = 0x4000, scoped, tag = 'output window, operand 0, single buffered']
    %6 = vsyncpa [#allocation3], 0
    %7 = vsyncpa [#allocation4], 0
    // Predicated region
    $region2: #{tpu_custom_call.1} parent=1 // pred_check
      _
    $region3: #{tpu_custom_call.1} parent=1 // pred_check_branch
      %9 = sbr.rel (0) target = $region5
    $region4: #{tpu_custom_call.1} parent=1 // pred_region
      %11 = vsyncadd [#allocation3], 0
      %s12 = sshll.u32 %s0, 4
      %s13 = int_to_ptr.hbm [resolvable:$true] %s12
      %s14 = sshll.u32 [#allocation2], 4
      %s15 = int_to_ptr.vmem [resolvable:$true] %s14
      %20 = dma.hbm_to_vmem [thread:$0]  %s13, 2048, %s15, [#allocation3], 128, 128, 8
    $region5: #{tpu_custom_call.1} parent=1 // pred_fallthru
      _
    // Predicated region
    $region6: #{tpu_custom_call.1} parent=1 // pred_check
      _
    $region7: #{tpu_custom_call.1} parent=1 // pred_check_branch
      %22 = sbr.rel (0) target = $region9
    $region8: #{tpu_custom_call.1} parent=1 // pred_region
      %24 = dma.done [#allocation3], 2048
    $region9: #{tpu_custom_call.1} parent=1 // pred_fallthru
      _
    %v25 = vld [vmem:[#allocation2] sm:$0xff]
    %v26 = vld [vmem:[#allocation2 + $0x8] sm:$0xff]
    %v27 = vld [vmem:[#allocation2 + $0x10] sm:$0xff]
    %v28 = vld [vmem:[#allocation2 + $0x18] sm:$0xff]
    %v29 = vld [vmem:[#allocation2 + $0x20] sm:$0xff]
    %v30 = vld [vmem:[#allocation2 + $0x28] sm:$0xff]
    %v31 = vld [vmem:[#allocation2 + $0x30] sm:$0xff]
    %v32 = vld [vmem:[#allocation2 + $0x38] sm:$0xff]
    %v33 = vld [vmem:[#allocation2 + $0x40] sm:$0xff]
    %v34 = vld [vmem:[#allocation2 + $0x48] sm:$0xff]
    %v35 = vld [vmem:[#allocation2 + $0x50] sm:$0xff]
    %v36 = vld [vmem:[#allocation2 + $0x58] sm:$0xff]
    %v37 = vld [vmem:[#allocation2 + $0x60] sm:$0xff]
    %v38 = vld [vmem:[#allocation2 + $0x68] sm:$0xff]
    %v39 = vld [vmem:[#allocation2 + $0x70] sm:$0xff]
    %v40 = vld [vmem:[#allocation2 + $0x78] sm:$0xff]
    %v49 = vrot.slane %v26, 7
    %v50 = vrot.slane %v28, 7
    %v51 = vrot.slane %v30, 7
    %v52 = vrot.slane %v32, 7
    %v53 = vrot.slane %v34, 7
    %v54 = vrot.slane %v36, 7
    %v55 = vrot.slane %v38, 7
    %v56 = vrot.slane %v40, 7
    %vm73 = vcmask 1040384
    %v74 = vrot.slane %v25, 7
    %v75 = vsel %vm73, %v74, %v49
    %v76 = vrot.slane %v27, 7
    %v77 = vsel %vm73, %v76, %v50
    %v78 = vrot.slane %v29, 7
    %v79 = vsel %vm73, %v78, %v51
    %v80 = vrot.slane %v31, 7
    %v81 = vsel %vm73, %v80, %v52
    %v82 = vrot.slane %v33, 7
    %v83 = vsel %vm73, %v82, %v53
    %v84 = vrot.slane %v35, 7
    %v85 = vsel %vm73, %v84, %v54
    %v86 = vrot.slane %v37, 7
    %v87 = vsel %vm73, %v86, %v55
    %v88 = vrot.slane %v39, 7
    %v89 = vsel %vm73, %v88, %v56
    %v106 = vsel %vm73, %v49, %v74
    %v107 = vsel %vm73, %v50, %v76
    %v108 = vsel %vm73, %v51, %v78
    %v109 = vsel %vm73, %v52, %v80
    %v110 = vsel %vm73, %v53, %v82
    %v111 = vsel %vm73, %v54, %v84
    %v112 = vsel %vm73, %v55, %v86
    %v113 = vsel %vm73, %v56, %v88
    %v114 = vsub.f32 %v25, %v106
    %v115 = vsub.f32 %v26, %v75
    %v116 = vsub.f32 %v27, %v107
    %v117 = vsub.f32 %v28, %v77
    %v118 = vsub.f32 %v29, %v108
    %v119 = vsub.f32 %v30, %v79
    %v120 = vsub.f32 %v31, %v109
    %v121 = vsub.f32 %v32, %v81
    %v122 = vsub.f32 %v33, %v110
    %v123 = vsub.f32 %v34, %v83
    %v124 = vsub.f32 %v35, %v111
    %v125 = vsub.f32 %v36, %v85
    %v126 = vsub.f32 %v37, %v112
    %v127 = vsub.f32 %v38, %v87
    %v128 = vsub.f32 %v39, %v113
    %v129 = vsub.f32 %v40, %v89
    %130 = vrot.lane.b32.xlu0 %v25, 113
    %v131 = vpop.permute.xlu0 %130
    %132 = vrot.lane.b32.xlu0 %v26, 113
    %v133 = vpop.permute.xlu0 %132
    %134 = vrot.lane.b32.xlu0 %v27, 113
    %v135 = vpop.permute.xlu0 %134
    %136 = vrot.lane.b32.xlu0 %v28, 113
    %v137 = vpop.permute.xlu0 %136
    %138 = vrot.lane.b32.xlu0 %v29, 113
    %v139 = vpop.permute.xlu0 %138
    %140 = vrot.lane.b32.xlu0 %v30, 113
    %v141 = vpop.permute.xlu0 %140
    %142 = vrot.lane.b32.xlu0 %v31, 113
    %v143 = vpop.permute.xlu0 %142
    %144 = vrot.lane.b32.xlu0 %v32, 113
    %v145 = vpop.permute.xlu0 %144
    %146 = vrot.lane.b32.xlu0 %v33, 113
    %v147 = vpop.permute.xlu0 %146
    %148 = vrot.lane.b32.xlu0 %v34, 113
    %v149 = vpop.permute.xlu0 %148
    %150 = vrot.lane.b32.xlu0 %v35, 113
    %v151 = vpop.permute.xlu0 %150
    %152 = vrot.lane.b32.xlu0 %v36, 113
    %v153 = vpop.permute.xlu0 %152
    %154 = vrot.lane.b32.xlu0 %v37, 113
    %v155 = vpop.permute.xlu0 %154
    %156 = vrot.lane.b32.xlu0 %v38, 113
    %v157 = vpop.permute.xlu0 %156
    %158 = vrot.lane.b32.xlu0 %v39, 113
    %v159 = vpop.permute.xlu0 %158
    %160 = vrot.lane.b32.xlu0 %v40, 113
    %v161 = vpop.permute.xlu0 %160
    %178 = vrot.lane.b32.xlu0 %v25, 1
    %v179 = vpop.permute.xlu0 %178
    %180 = vrot.lane.b32.xlu0 %v26, 1
    %v181 = vpop.permute.xlu0 %180
    %182 = vrot.lane.b32.xlu0 %v27, 1
    %v183 = vpop.permute.xlu0 %182
    %184 = vrot.lane.b32.xlu0 %v28, 1
    %v185 = vpop.permute.xlu0 %184
    %186 = vrot.lane.b32.xlu0 %v29, 1
    %v187 = vpop.permute.xlu0 %186
    %188 = vrot.lane.b32.xlu0 %v30, 1
    %v189 = vpop.permute.xlu0 %188
    %190 = vrot.lane.b32.xlu0 %v31, 1
    %v191 = vpop.permute.xlu0 %190
    %192 = vrot.lane.b32.xlu0 %v32, 1
    %v193 = vpop.permute.xlu0 %192
    %194 = vrot.lane.b32.xlu0 %v33, 1
    %v195 = vpop.permute.xlu0 %194
    %196 = vrot.lane.b32.xlu0 %v34, 1
    %v197 = vpop.permute.xlu0 %196
    %198 = vrot.lane.b32.xlu0 %v35, 1
    %v199 = vpop.permute.xlu0 %198
    %200 = vrot.lane.b32.xlu0 %v36, 1
    %v201 = vpop.permute.xlu0 %200
    %202 = vrot.lane.b32.xlu0 %v37, 1
    %v203 = vpop.permute.xlu0 %202
    %204 = vrot.lane.b32.xlu0 %v38, 1
    %v205 = vpop.permute.xlu0 %204
    %206 = vrot.lane.b32.xlu0 %v39, 1
    %v207 = vpop.permute.xlu0 %206
    %208 = vrot.lane.b32.xlu0 %v40, 1
    %v209 = vpop.permute.xlu0 %208
    %vm226 = vcmask 7168
    %v227 = vsel %vm226, %v131, %v179
    %v228 = vsel %vm226, %v133, %v181
    %v229 = vsel %vm226, %v135, %v183
    %v230 = vsel %vm226, %v137, %v185
    %v231 = vsel %vm226, %v139, %v187
    %v232 = vsel %vm226, %v141, %v189
    %v233 = vsel %vm226, %v143, %v191
    %v234 = vsel %vm226, %v145, %v193
    %v235 = vsel %vm226, %v147, %v195
    %v236 = vsel %vm226, %v149, %v197
    %v237 = vsel %vm226, %v151, %v199
    %v238 = vsel %vm226, %v153, %v201
    %v239 = vsel %vm226, %v155, %v203
    %v240 = vsel %vm226, %v157, %v205
    %v241 = vsel %vm226, %v159, %v207
    %v242 = vsel %vm226, %v161, %v209
    %v243 = vsub.f32 %v25, %v227
    %v244 = vsub.f32 %v26, %v228
    %v245 = vsub.f32 %v27, %v229
    %v246 = vsub.f32 %v28, %v230
    %v247 = vsub.f32 %v29, %v231
    %v248 = vsub.f32 %v30, %v232
    %v249 = vsub.f32 %v31, %v233
    %v250 = vsub.f32 %v32, %v234
    %v251 = vsub.f32 %v33, %v235
    %v252 = vsub.f32 %v34, %v236
    %v253 = vsub.f32 %v35, %v237
    %v254 = vsub.f32 %v36, %v238
    %v255 = vsub.f32 %v37, %v239
    %v256 = vsub.f32 %v38, %v240
    %v257 = vsub.f32 %v39, %v241
    %v258 = vsub.f32 %v40, %v242
    %v259 = vmul.f32 %v114, %v114
    %v260 = vmul.f32 %v115, %v115
    %v261 = vmul.f32 %v116, %v116
    %v262 = vmul.f32 %v117, %v117
    %v263 = vmul.f32 %v118, %v118
    %v264 = vmul.f32 %v119, %v119
    %v265 = vmul.f32 %v120, %v120
    %v266 = vmul.f32 %v121, %v121
    %v267 = vmul.f32 %v122, %v122
    %v268 = vmul.f32 %v123, %v123
    %v269 = vmul.f32 %v124, %v124
    %v270 = vmul.f32 %v125, %v125
    %v271 = vmul.f32 %v126, %v126
    %v272 = vmul.f32 %v127, %v127
    %v273 = vmul.f32 %v128, %v128
    %v274 = vmul.f32 %v129, %v129
    %vm275 = vcmask 130048
    %v276 = vsel %vm275, %v259, 0.0
    %v277 = vsel %vm275, %v261, 0.0
    %v278 = vadd.f32 %v276, %v277
    %v279 = vsel %vm275, %v263, 0.0
    %v280 = vadd.f32 %v278, %v279
    %v281 = vsel %vm275, %v265, 0.0
    %v282 = vadd.f32 %v280, %v281
    %v283 = vsel %vm275, %v267, 0.0
    %v284 = vadd.f32 %v282, %v283
    %v285 = vsel %vm275, %v269, 0.0
    %v286 = vadd.f32 %v284, %v285
    %v287 = vsel %vm275, %v271, 0.0
    %v288 = vadd.f32 %v286, %v287
    %v289 = vsel %vm275, %v273, 0.0
    %v290 = vadd.f32 %v288, %v289
    %v291 = vsel %vm275, %v260, 0.0
    %v292 = vsel %vm275, %v262, 0.0
    %v293 = vadd.f32 %v291, %v292
    %v294 = vsel %vm275, %v264, 0.0
    %v295 = vadd.f32 %v293, %v294
    %v296 = vsel %vm275, %v266, 0.0
    %v297 = vadd.f32 %v295, %v296
    %v298 = vsel %vm275, %v268, 0.0
    %v299 = vadd.f32 %v297, %v298
    %v300 = vsel %vm275, %v270, 0.0
    %v301 = vadd.f32 %v299, %v300
    %v302 = vsel %vm275, %v272, 0.0
    %v303 = vadd.f32 %v301, %v302
    %v304 = vsel %vm275, %v274, 0.0
    %v305 = vadd.f32 %v303, %v304
    %v306 = vmul.f32 %v243, %v243
    %v307 = vmul.f32 %v244, %v244
    %v308 = vmul.f32 %v245, %v245
    %v309 = vmul.f32 %v246, %v246
    %v310 = vmul.f32 %v247, %v247
    %v311 = vmul.f32 %v248, %v248
    %v312 = vmul.f32 %v249, %v249
    %v313 = vmul.f32 %v250, %v250
    %v314 = vmul.f32 %v251, %v251
    %v315 = vmul.f32 %v252, %v252
    %v316 = vmul.f32 %v253, %v253
    %v317 = vmul.f32 %v254, %v254
    %v318 = vmul.f32 %v255, %v255
    %v319 = vmul.f32 %v256, %v256
    %v320 = vmul.f32 %v257, %v257
    %v321 = vmul.f32 %v258, %v258
    %v322 = vsel %vm275, %v306, 0.0
    %v323 = vsel %vm275, %v308, 0.0
    %v324 = vadd.f32 %v322, %v323
    %v325 = vsel %vm275, %v310, 0.0
    %v326 = vadd.f32 %v324, %v325
    %v327 = vsel %vm275, %v312, 0.0
    %v328 = vadd.f32 %v326, %v327
    %v329 = vsel %vm275, %v314, 0.0
    %v330 = vadd.f32 %v328, %v329
    %v331 = vsel %vm275, %v316, 0.0
    %v332 = vadd.f32 %v330, %v331
    %v333 = vsel %vm275, %v318, 0.0
    %v334 = vadd.f32 %v332, %v333
    %v335 = vsel %vm275, %v320, 0.0
    %v336 = vadd.f32 %v334, %v335
    %v337 = vsel %vm275, %v307, 0.0
    %v338 = vsel %vm275, %v309, 0.0
    %v339 = vadd.f32 %v337, %v338
    %v340 = vsel %vm275, %v311, 0.0
    %v341 = vadd.f32 %v339, %v340
    %v342 = vsel %vm275, %v313, 0.0
    %v343 = vadd.f32 %v341, %v342
    %v344 = vsel %vm275, %v315, 0.0
    %v345 = vadd.f32 %v343, %v344
    %v346 = vsel %vm275, %v317, 0.0
    %v347 = vadd.f32 %v345, %v346
    %v348 = vsel %vm275, %v319, 0.0
    %v349 = vadd.f32 %v347, %v348
    %v350 = vsel %vm275, %v321, 0.0
    %v351 = vadd.f32 %v349, %v350
    %352 = vst.msk [vmem:[#allocation5] sm:$0xff] %vm275, %v290
    %353 = vst.msk [vmem:[#allocation5 + $0x8] sm:$0xff] %vm275, %v305
    %s354 = scalar_lea.vmem [#allocation5], 16
    %355 = vst.msk [vmem:[%s354] sm:$0xff] %vm275, %v336
    %356 = vst.msk [vmem:[%s354 + $0x8] sm:$0xff] %vm275, %v351
    // Predicated region
    $region10: #{tpu_custom_call.1} parent=1 // pred_check
      _
    $region11: #{tpu_custom_call.1} parent=1 // pred_check_branch
      %358 = sbr.rel (0) target = $region13
    $region12: #{tpu_custom_call.1} parent=1 // pred_region
      %360 = vsyncadd [#allocation4], 0
      %s361 = sshll.u32 [#allocation5], 4
      %s362 = int_to_ptr.vmem [resolvable:$true] %s361
      %s363 = sshll.u32 %s1, 4
      %s364 = int_to_ptr.hbm [resolvable:$true] %s363
      %369 = dma.vmem_to_hbm [thread:$0]  %s362, 512, %s364, [#allocation4], 128, 128, 8
    $region13: #{tpu_custom_call.1} parent=1 // pred_fallthru
      _
    // Predicated region
    $region14: #{tpu_custom_call.1} parent=1 // pred_check
      _
    $region15: #{tpu_custom_call.1} parent=1 // pred_check_branch
      %371 = sbr.rel (0) target = $region17
    $region16: #{tpu_custom_call.1} parent=1 // pred_region
      %373 = dma.done [#allocation4], 512
    $region17: #{tpu_custom_call.1} parent=1 // pred_fallthru
      _
    %374 = vsyncpa [#allocation3], 1
    %375 = vsyncpa [#allocation4], 1

</llo_original>
